<compile_context>
chip_gen: v6e
topology: v6e:2x2x1
jax: 0.10.0
libtpu: 0.0.40
codegen_flags: <defaults>
</compile_context>

<pallas_src>
import functools

import jax
import jax.numpy as jnp
from jax.experimental import pallas as pl
from jax.experimental.pallas import tpu as pltpu


_MAX_LANE_TILE = 16384        # lane-dim cap per block (multiple of 128)
_MAX_BLOCK_BYTES = 16 << 20   # never exceed 16 MiB per input block


def _round_up(n, m):
    return ((n + m - 1) // m) * m


def _cdiv(a, b):
    return -(-a // b)


def _vmem_limit_bytes():
    """Generation-aware scoped-VMEM budget (v5e/v6e: 128 MiB phys, v7x: 64 MiB)."""
    try:
        cap = int(pltpu.get_tpu_info().vmem_capacity_bytes)
    except Exception:
        cap = 64 * 1024 * 1024          # conservative fallback (v7x-sized)
    # Leave ~25% headroom for Mosaic-internal scratch, cap at 100 MiB.
    return min((cap * 3) // 4, 100 * 1024 * 1024)


def _pick_tiles(rows, cols, in_itemsize, out_itemsize, vmem_limit, min_steps=8):
    """Lane-dense, natively-tiled block sized to the per-generation VMEM budget."""
    col_tile = cols if cols <= _MAX_LANE_TILE else _MAX_LANE_TILE
    # Sublane packing of the narrowest dtype keeps input AND output blocks
    # natively tiled (8 for f32, 16 for bf16, 32 for int8).
    sub = 8 * max(1, 4 // min(in_itemsize, out_itemsize))
    # Double-buffered footprint ~= 2*(in_block + out_block); keep <= ~80% of limit.
    elem_budget = max(
        sub * 128,
        min((vmem_limit * 2 // 5) // (in_itemsize + out_itemsize),
            _MAX_BLOCK_BYTES // in_itemsize),
    )
    row_tile = max(1, elem_budget // col_tile)
    row_tile = max(sub, (row_tile // sub) * sub)
    row_tile = min(row_tile, _round_up(rows, sub))

    # Guarantee enough grid steps for megacore sharding + pipeline overlap.
    while _cdiv(rows, row_tile) * _cdiv(cols, col_tile) < min_steps:
        if row_tile >= 2 * sub:
            row_tile = max(sub, ((row_tile // 2) // sub) * sub)
        elif col_tile > 128:
            col_tile = max(128, ((col_tile // 2) // 128) * 128)
        else:
            break
    return int(row_tile), int(col_tile)


def _normalize_kernel(x_ref, tab_ref, o_ref, *, row_table):
    # x_ref: (row_tile, col_tile) input tile
    # tab_ref: merged scale/bias table
    #   row_table=True  -> (row_tile, 2): [:,0]=1/std, [:,1]=-mean/std (per row)
    #   row_table=False -> (2, col_tile): [0,:]=1/std, [1,:]=-mean/std (per col)
    x = x_ref[...].astype(jnp.float32)
    if row_table:
        scale, bias = tab_ref[:, 0:1], tab_ref[:, 1:2]   # (row_tile, 1)
    else:
        scale, bias = tab_ref[0:1, :], tab_ref[1:2, :]   # (1, col_tile)
    o_ref[...] = (x * scale + bias).astype(o_ref.dtype)


def normalize(x, mean, std, *, keep_input_dtype=False):
    """(x - mean[None,:,None,None]) / std[None,:,None,None], NCHW layout."""
    B, C, H, W = x.shape
    assert mean.shape == (C,) and std.shape == (C,)
    out_dtype = (x.dtype if keep_input_dtype
                 else jnp.result_type(x.dtype, mean.dtype, std.dtype))
    in_itemsize = jnp.dtype(x.dtype).itemsize
    out_itemsize = jnp.dtype(out_dtype).itemsize

    inv_std = 1.0 / std.astype(jnp.float32)
    neg_mean_over_std = -mean.astype(jnp.float32) * inv_std

    # Lane-dense flattening: keep the long axis on the 128-lane dimension.
    row_table = (H * W) >= 128
    if row_table:
        rows, cols = B * C, H * W
        scale_vec = jnp.tile(inv_std, B)                 # row r -> channel r % C
        bias_vec = jnp.tile(neg_mean_over_std, B)
    else:
        # Small spatial maps: fold channels into the lane axis instead.
        rows, cols = B, C * H * W
        scale_vec = jnp.repeat(inv_std, H * W)           # col c -> channel c // (H*W)
        bias_vec = jnp.repeat(neg_mean_over_std, H * W)

    x2 = x.reshape(rows, cols)

    vmem_limit = _vmem_limit_bytes()
    row_tile, col_tile = _pick_tiles(rows, cols, in_itemsize, out_itemsize, vmem_limit)
    n_row, n_col = _cdiv(rows, row_tile), _cdiv(cols, col_tile)

    # Merged scale/bias table, padded so every table DMA is fully in-bounds.
    if row_table:
        padded_rows = n_row * row_tile
        tab = jnp.stack([scale_vec, bias_vec], axis=1)              # (rows, 2)
        tab = jnp.pad(tab, ((0, padded_rows - rows), (0, 0)))
        tab_spec = pl.BlockSpec((row_tile, 2), lambda i, j: (i, 0))
    else:
        padded_cols = n_col * col_tile
        tab = jnp.stack([scale_vec, bias_vec], axis=0)              # (2, cols)
        tab = jnp.pad(tab, ((0, 0), (0, padded_cols - cols)))
        tab_spec = pl.BlockSpec((2, col_tile), lambda i, j: (0, j))

    out2 = pl.pallas_call(
        functools.partial(_normalize_kernel, row_table=row_table),
        out_shape=jax.ShapeDtypeStruct((rows, cols), out_dtype),
        grid=(n_row, n_col),
        in_specs=[
            pl.BlockSpec((row_tile, col_tile), lambda i, j: (i, j)),  # x
            tab_spec,                                                 # scale/bias
        ],
        out_specs=pl.BlockSpec((row_tile, col_tile), lambda i, j: (i, j)),
        compiler_params=pltpu.CompilerParams(
            dimension_semantics=("parallel", "parallel"),
            vmem_limit_bytes=vmem_limit,
        ),
    )(x2, tab)

    return out2.reshape(B, C, H, W)


if __name__ == "__main__":
    # The module hardcodes 3 channels via reshape(1, 3, 1, 1).
    mean = jnp.asarray([0.485, 0.456, 0.406], dtype=jnp.float32)
    std = jnp.asarray([0.229, 0.224, 0.225], dtype=jnp.float32)

    # jit so the tiny wrapper-side table prep fuses/constant-folds into one program.
    normalize_fn = jax.jit(normalize)

    key = jax.random.PRNGKey(0)
    x = jax.random.uniform(key, (2, 3, 16, 16), dtype=jnp.float32)
    out = jax.block_until_ready(normalize_fn(x, mean, std))
    ref = (x - mean.reshape(1, 3, 1, 1)) / std.reshape(1, 3, 1, 1)
    assert out.shape == ref.shape and out.dtype == ref.dtype
    assert jnp.allclose(out, ref, atol=1e-5, rtol=1e-5)

    # Exercise the small-spatial (H*W < 128) lane-dense fallback path too.
    x_small = jax.random.uniform(jax.random.PRNGKey(1), (2, 3, 7, 7), dtype=jnp.float32)
    out_small = jax.block_until_ready(normalize_fn(x_small, mean, std))
    ref_small = (x_small - mean.reshape(1, 3, 1, 1)) / std.reshape(1, 3, 1, 1)
    assert jnp.allclose(out_small, ref_small, atol=1e-5, rtol=1e-5)

    print("KERNEL_OK")
</pallas_src>

<mosaic_0001>
module attributes {stable_mosaic.version = 11 : i64} {
  func.func @_normalize_kernel(%arg0: i32, %arg1: i32, %arg2: memref<8x128xf32, #tpu.memory_space<vmem>>, %arg3: memref<8x2xf32, #tpu.memory_space<vmem>>, %arg4: memref<8x128xf32, #tpu.memory_space<vmem>>) attributes {dimension_semantics = [#tpu.dimension_semantics<parallel>, #tpu.dimension_semantics<parallel>], iteration_bounds = array<i64: 1, 2>, scalar_prefetch = 0 : i64, scratch_operands = 0 : i64, tpu.core_type = #tpu.core_type<tc>, window_params = [{transform_indices = @transform_0, window_bounds = array<i64: 8, 128>}, {transform_indices = @transform_1, window_bounds = array<i64: 8, 2>}, {transform_indices = @transform_2, window_bounds = array<i64: 8, 128>}]} {
    %c0 = arith.constant 0 : index
    %c0_0 = arith.constant 0 : index
    %0 = vector.load %arg2[%c0, %c0_0] : memref<8x128xf32, #tpu.memory_space<vmem>>, vector<8x128xf32>
    %c0_1 = arith.constant 0 : index
    %c0_2 = arith.constant 0 : index
    %1 = vector.load %arg3[%c0_1, %c0_2] : memref<8x2xf32, #tpu.memory_space<vmem>>, vector<8x1xf32>
    %c0_3 = arith.constant 0 : index
    %c1 = arith.constant 1 : index
    %2 = vector.load %arg3[%c0_3, %c1] : memref<8x2xf32, #tpu.memory_space<vmem>>, vector<8x1xf32>
    %3 = vector.broadcast %1 : vector<8x1xf32> to vector<8x128xf32>
    %4 = arith.mulf %0, %3 : vector<8x128xf32>
    %5 = vector.broadcast %2 : vector<8x1xf32> to vector<8x128xf32>
    %6 = arith.addf %4, %5 : vector<8x128xf32>
    %c0_4 = arith.constant 0 : index
    %c0_5 = arith.constant 0 : index
    %7 = vector.load %arg4[%c0_4, %c0_5] : memref<8x128xf32, #tpu.memory_space<vmem>>, vector<8x128xf32>
    tpu.vector_store %arg4[%c0_4, %c0_5], %6 {strides = array<i32>} : memref<8x128xf32, #tpu.memory_space<vmem>>, vector<8x128xf32>,
    return
  }
  func.func @transform_0(%arg0: i32, %arg1: i32) -> (i32, i32) {
    %c0_i32 = arith.constant 0 : i32
    return %arg0, %arg1 : i32, i32
  }
  func.func @transform_1(%arg0: i32, %arg1: i32) -> (i32, i32) {
    %c0_i32 = arith.constant 0 : i32
    %c0_i32_0 = arith.constant 0 : i32
    return %arg0, %c0_i32 : i32, i32
  }
  func.func @transform_2(%arg0: i32, %arg1: i32) -> (i32, i32) {
    %c0_i32 = arith.constant 0 : i32
    return %arg0, %arg1 : i32, i32
  }
}

</mosaic_0001>

<llo_original>
// kernel: tile.17
$region0: #{tile.17}
  #allocation0 [shape = 's32[1]{0}', space=sflag, size = 0x4, scoped, tag = 'scoped memory for tile.17']
  %s0 = inlined_call_operand.vmem [shape: f32[3], index: 0, kind: input, shape index: {}]
  %s1 = inlined_call_operand.vmem [shape: f32[2,3], index: 1, kind: output, shape index: {}]
  // Predicated region
  $region2: #{tile.17} parent=0 // pred_check
    _
  $region3: #{tile.17} parent=0 // pred_check_branch
    %3 = sbr.rel (0) target = $region5
  $region4: #{tile.17} parent=0 // pred_region
    _
  $region5: #{tile.17} parent=0 // pred_fallthru
    _
  %v4 = vld [vmem:[%s0] ss:$0 sm:$0xff]
  %5 = vst [vmem:[%s1] sm:$0x3] %v4

// kernel: tile.19
$region0: #{tile.19}
  %s0 = inlined_call_operand.vmem [shape: f32[2,3], index: 0, kind: input, shape index: {}]
  %s1 = inlined_call_operand.vmem [shape: f32[6,1], index: 1, kind: output, shape index: {}]
  $region1: #{tile.19} parent=0
    #allocation0 [shape = 'u8[4096]{0}', space=vmem, size = 0x1000, scoped, tag = 'scoped mem for output reshape']
    #allocation1 [shape = 'u8[4096]{0}', space=vmem, size = 0x1000, scoped, tag = 'scoped mem for input reshape']
    %s3 = sshll.u32 1, 2
    %s4 = ssub.s32 %s3, 1
    %v5 = vld [vmem:[%s0] sm:%s4]
    %6 = vst [vmem:[#allocation1] sm:%s4] %v5
    %v7 = vld [vmem:[#allocation1] sm:$0x1]
    %vm8 = vcmask 23552
    %9 = vst.msk [vmem:[#allocation0] sm:$0x1] %vm8, %v7
    %s10 = scalar_lea.vmem [#allocation1], 1
    %v11 = vld [vmem:[%s10] sm:$0x1]
    %12 = vrot.lane.b32.xlu0 %v11, 3
    %v13 = vpop.permute.xlu0 %12
    %vm14 = vcmask 48152
    %15 = vst.msk [vmem:[#allocation0] sm:$0x1] %vm14, %v13
    %s17 = sshll.u32 1, 1
    %s18 = ssub.s32 %s17, 1
    %v20 = vld [vmem:[#allocation0] sm:%s18]
    %s21 = sshll.u32 1, 1
    %s22 = ssub.s32 %s21, 1
    %23 = vst [vmem:[%s1] sm:%s22] %v20

// kernel: normalize.1
$region0: #{normalize.1}
  #allocation0 [shape = 'u32[]', space=smem, size = 0x4, offset = 0x4, fixed_abs, tag = 'smem constant byte address 0x4 - core index']
  #allocation1 [shape = 'u32[144,128]{1,0:T(1,128)}', space=vmem, size = 0x12000, scoped, tag = 'internal scratch']
  %s0 = inlined_call_operand.vmem [shape: f32[6,256], index: 0, kind: input, shape index: {}]
  %s1 = inlined_call_operand.vmem [shape: f32[8,2], index: 1, kind: input, shape index: {}]
  %s2 = inlined_call_operand.vmem [shape: f32[6,256], index: 2, kind: output, shape index: {}]
  %s3 = sld [smem:[#allocation0]]
  $region41: #{normalize.1} parent=0
    _
  %s5 = ssub.s32 1, %s3
  %s6 = scalar_select 0, %s5, %s3
  loop: start=0, step=1, limit=4
  $region2: #{normalize.1} parent=0 // loop_pre_header
    _
  $region3: #{normalize.1} parent=0 // loop_header
    %s8 = sphi 0, %s12
    %p9 = scmp.ge.s32.totalorder %s8, 4
    %s15 = sphi 0, %s27
    %s16 = sphi 0, %s23
    %s17 = sphi 0, %s15
    %s18 = sphi 0, %s16
    %s19 = sphi 0, %s17
    %s20 = sphi 0, %s18
    %s32 = sphi 0, %s34
    %s35 = sphi 0, %s32
    %s36 = sphi 0, %s35
    %s52 = sphi 0, %s36
    %s58 = sphi 0, %s60
    %s61 = sphi 0, %s58
    %s62 = sphi 0, %s61
    %s78 = sphi 0, %s62
    %s86 = sphi 0, %s88
    %s89 = sphi 0, %s86
    %s90 = sphi 0, %s89
    %s106 = sphi 0, %s90
  $region4: #{normalize.1} parent=0 // loop_header_branch
    %11 = sbr.rel (%p9) target = $region8
  $region5: #{normalize.1} parent=0 // loop_body
    %s13 = ssub.s32 %s8, 1
    %s14 = ssub.s32 %s8, 2
    %s21 = sadd.s32 1, %s16
    %p22 = scmp.ge.s32.totalorder %s21, 2
    %s23 = scalar_select %p22, 0, %s21
    %s24 = sadd.s32 1, %s15
    %s25 = scalar_select %p22, %s24, %s15
    %p26 = scmp.ge.s32.totalorder %s25, 1
    %s27 = scalar_select %p26, 0, %s25
    %s28 = ssub.s32 %s15, %s27
    %s29 = ssub.s32 %s16, %s23
    %s30 = sor.u32 %s28, %s29
    %p31 = scmp.eq.s32.totalorder %s30, 0
    %s33 = sadd.s32 %s32, 1
    %s34 = scalar_select %p31, %s32, %s33
    %p37 = pneg %p31
    %p38 = scmp.eq.s32.totalorder %s8, 1
    %p39 = por %p37, %p38
    %p40 = scmp.ne.s32.totalorder %s32, %s35
    %p41 = scmp.eq.s32.totalorder %s8, 0
    %p42 = por %p40, %p41
    %p43 = scmp.ne.s32.totalorder %s32, %s35
    %p44 = scmp.eq.s32.totalorder %s13, 1
    %p45 = por %p43, %p44
    %p46 = scmp.ne.s32.totalorder %s35, %s36
    %p47 = scmp.eq.s32.totalorder %s13, 0
    %p48 = por %p46, %p47
    %p49 = scmp.ne.s32.totalorder %s35, %s36
    %p50 = scmp.eq.s32.totalorder %s14, 1
    %p51 = por %p49, %p50
    %p53 = scmp.ne.s32.totalorder %s36, %s52
    %p54 = scmp.eq.s32.totalorder %s14, 0
    %p55 = por %p53, %p54
    %s56 = ssub.s32 %s15, %s27
    %p57 = scmp.eq.s32.totalorder %s56, 0
    %s59 = sadd.s32 %s58, 1
    %s60 = scalar_select %p57, %s58, %s59
    %p63 = pneg %p57
    %p64 = scmp.eq.s32.totalorder %s8, 1
    %p65 = por %p63, %p64
    %p66 = scmp.ne.s32.totalorder %s58, %s61
    %p67 = scmp.eq.s32.totalorder %s8, 0
    %p68 = por %p66, %p67
    %p69 = scmp.ne.s32.totalorder %s58, %s61
    %p70 = scmp.eq.s32.totalorder %s13, 1
    %p71 = por %p69, %p70
    %p72 = scmp.ne.s32.totalorder %s61, %s62
    %p73 = scmp.eq.s32.totalorder %s13, 0
    %p74 = por %p72, %p73
    %p75 = scmp.ne.s32.totalorder %s61, %s62
    %p76 = scmp.eq.s32.totalorder %s14, 1
    %p77 = por %p75, %p76
    %p79 = scmp.ne.s32.totalorder %s62, %s78
    %p80 = scmp.eq.s32.totalorder %s14, 0
    %p81 = por %p79, %p80
    %s82 = ssub.s32 %s15, %s27
    %s83 = ssub.s32 %s16, %s23
    %s84 = sor.u32 %s82, %s83
    %p85 = scmp.eq.s32.totalorder %s84, 0
    %s87 = sadd.s32 %s86, 1
    %s88 = scalar_select %p85, %s86, %s87
    %p91 = pneg %p85
    %p92 = scmp.eq.s32.totalorder %s8, 1
    %p93 = por %p91, %p92
    %p94 = scmp.ne.s32.totalorder %s86, %s89
    %p95 = scmp.eq.s32.totalorder %s8, 0
    %p96 = por %p94, %p95
    %p97 = scmp.ne.s32.totalorder %s86, %s89
    %p98 = scmp.eq.s32.totalorder %s13, 1
    %p99 = por %p97, %p98
    %p100 = scmp.ne.s32.totalorder %s89, %s90
    %p101 = scmp.eq.s32.totalorder %s13, 0
    %p102 = por %p100, %p101
    %p103 = scmp.ne.s32.totalorder %s89, %s90
    %p104 = scmp.eq.s32.totalorder %s14, 1
    %p105 = por %p103, %p104
    %p107 = scmp.ne.s32.totalorder %s90, %s106
    %p108 = scmp.eq.s32.totalorder %s14, 0
    %p109 = por %p107, %p108
    %p110 = scmp.le.s32.totalorder 1, %s8
    %p111 = scmp.lt.s32.totalorder %s8, 3
    %p112 = pnand %p110, %p111
    %p113 = pneg %p112
    // Predicated region
    $region9: #{normalize.1} parent=5 // pred_check
      _
    $region10: #{normalize.1} parent=5 // pred_check_branch
      %115 = sbr.rel (%p112) target = $region12
    $region11: #{normalize.1} parent=5 // pred_region
      %s116 = ssub.s32 %s8, 1
      // Predicated region
      $region13: #{normalize.1} parent=11 // pred_check
        %p117 = pneg %p74
      $region14: #{normalize.1} parent=11 // pred_check_branch
        %119 = sbr.rel (%p117) target = $region16
      $region15: #{normalize.1} parent=11 // pred_region
        %p120 = scmp.lt.s32.totalorder %s17, 0
        %s121 = scalar_select %p120, %s17, 0
        %s122 = smul.addr %s121, 8
        %s123 = scalar_lea.vmem %s1, %s122
      $region16: #{normalize.1} parent=11 // pred_fallthru
        _
    $region12: #{normalize.1} parent=5 // pred_fallthru
      _
    %p124 = scmp.lt.s32.totalorder %s8, 2
    // Predicated region
    $region17: #{normalize.1} parent=5 // pred_check
      %p125 = pneg %p124
    $region18: #{normalize.1} parent=5 // pred_check_branch
      %127 = sbr.rel (%p125) target = $region20
    $region19: #{normalize.1} parent=5 // pred_region
      // Predicated region
      $region21: #{normalize.1} parent=19 // pred_check
        %p128 = pneg %p42
      $region22: #{normalize.1} parent=19 // pred_check_branch
        %130 = sbr.rel (%p128) target = $region24
      $region23: #{normalize.1} parent=19 // pred_region
        %p131 = scmp.lt.s32.totalorder %s15, 0
        %s132 = scalar_select %p131, %s15, 0
        %p133 = scmp.lt.s32.totalorder %s16, 1
        %s134 = scalar_select %p133, %s16, 1
        %s135 = smul.addr %s132, 2
        %s136 = sadd.s32 %s134, %s135
        %s137 = smul.addr %s136, 8
        %s138 = scalar_lea.vmem %s0, %s137
      $region24: #{normalize.1} parent=19 // pred_fallthru
        _
    $region20: #{normalize.1} parent=5 // pred_fallthru
      _
    %p139 = scmp.le.s32.totalorder 1, %s8
    %p140 = scmp.lt.s32.totalorder %s8, 3
    %p141 = pnand %p139, %p140
    %p142 = pneg %p141
    // Predicated region
    $region25: #{normalize.1} parent=5 // pred_check
      _
    $region26: #{normalize.1} parent=5 // pred_check_branch
      %144 = sbr.rel (%p141) target = $region28
    $region27: #{normalize.1} parent=5 // pred_region
      %s145 = ssub.s32 %s8, 1
      %p146 = scmp.lt.s32.totalorder %s17, 0
      %s147 = scalar_select %p146, %s17, 0
      %p148 = scmp.lt.s32.totalorder %s18, 1
      %s149 = scalar_select %p148, %s18, 1
      %s150 = smul.addr %s147, 2
      %s151 = sadd.s32 %s149, %s150
      %s152 = smul.addr %s151, 8
      %s153 = scalar_lea.vmem %s0, %s152
      %p154 = pneg %p48
      %p155 = pneg %p45
      %p156 = scmp.lt.s32.totalorder %s17, 0
      %s157 = scalar_select %p156, %s17, 0
      %s158 = smul.addr %s157, 8
      %s159 = scalar_lea.vmem %s1, %s158
      %p160 = pneg %p74
      %p161 = pneg %p71
      %p162 = pneg %p102
      %p163 = pneg %p99
      %p164 = scmp.lt.s32.totalorder %s17, 0
      %s165 = scalar_select %p164, %s17, 0
      %p166 = scmp.lt.s32.totalorder %s18, 1
      %s167 = scalar_select %p166, %s18, 1
      %s168 = smul.addr %s165, 2
      %s169 = sadd.s32 %s167, %s168
      %s170 = smul.addr %s169, 8
      %s171 = scalar_lea.vmem %s2, %s170
      %p172 = scmp.lt.s32.totalorder %s17, 0
      %s173 = scalar_select %p172, %s17, 0
      %p174 = scmp.lt.s32.totalorder %s18, 1
      %s175 = scalar_select %p174, %s18, 1
      %s176 = smul.addr %s173, 2
      %s177 = sadd.s32 %s175, %s176
      %s178 = smul.addr %s177, 8
      %s179 = scalar_lea.vmem %s0, %s178
      %p180 = scmp.lt.s32.totalorder %s17, 0
      %s181 = scalar_select %p180, %s17, 0
      %s182 = smul.addr %s181, 8
      %s183 = scalar_lea.vmem %s1, %s182
      %p184 = scmp.lt.s32.totalorder %s17, 0
      %s185 = scalar_select %p184, %s17, 0
      %p186 = scmp.lt.s32.totalorder %s18, 1
      %s187 = scalar_select %p186, %s18, 1
      %s188 = smul.addr %s185, 2
      %s189 = sadd.s32 %s187, %s188
      %s190 = smul.addr %s189, 8
      %s191 = scalar_lea.vmem %s2, %s190
      %v192 = vld [vmem:[%s179] sm:$0xff]
      %v193 = vld [vmem:[%s183] sm:$0xff]
      %195 = vset.pattern.permute.xlu0 0
      %196 = vperm.xlu0 %195, %v193
      %v197 = vpop.permute.xlu0 %196
      %v199 = vmul.f32 %v192, %v197
      %200 = vset.pattern.permute.xlu0 1
      %201 = vperm.xlu0 %200, %v193
      %v202 = vpop.permute.xlu0 %201
      %v204 = vadd.f32 %v199, %v202
      %205 = vst [vmem:[%s191] sm:$0xff] %v204
      %p206 = scmp.lt.s32.totalorder %s17, 0
      %s207 = scalar_select %p206, %s17, 0
      %p208 = scmp.lt.s32.totalorder %s18, 1
      %s209 = scalar_select %p208, %s18, 1
      %s210 = smul.addr %s207, 2
      %s211 = sadd.s32 %s209, %s210
      %s212 = smul.addr %s211, 8
      %s213 = scalar_lea.vmem %s2, %s212
      // Predicated region
      $region29: #{normalize.1} parent=27 // pred_check
        %p214 = pneg %p99
      $region30: #{normalize.1} parent=27 // pred_check_branch
        %216 = sbr.rel (%p214) target = $region32
      $region31: #{normalize.1} parent=27 // pred_region
        _
      $region32: #{normalize.1} parent=27 // pred_fallthru
        _
    $region28: #{normalize.1} parent=5 // pred_fallthru
      _
    %p217 = scmp.le.s32.totalorder 2, %s8
    // Predicated region
    $region33: #{normalize.1} parent=5 // pred_check
      %p218 = pneg %p217
    $region34: #{normalize.1} parent=5 // pred_check_branch
      %220 = sbr.rel (%p218) target = $region36
    $region35: #{normalize.1} parent=5 // pred_region
      %s221 = ssub.s32 %s8, 2
      // Predicated region
      $region37: #{normalize.1} parent=35 // pred_check
        %p222 = pneg %p105
      $region38: #{normalize.1} parent=35 // pred_check_branch
        %224 = sbr.rel (%p222) target = $region40
      $region39: #{normalize.1} parent=35 // pred_region
        %p225 = scmp.lt.s32.totalorder %s19, 0
        %s226 = scalar_select %p225, %s19, 0
        %p227 = scmp.lt.s32.totalorder %s20, 1
        %s228 = scalar_select %p227, %s20, 1
        %s229 = smul.addr %s226, 2
        %s230 = sadd.s32 %s228, %s229
        %s231 = smul.addr %s230, 8
        %s232 = scalar_lea.vmem %s2, %s231
      $region40: #{normalize.1} parent=35 // pred_fallthru
        _
    $region36: #{normalize.1} parent=5 // pred_fallthru
      _
  $region6: #{normalize.1} parent=0 // loop_footer
    %s12 = sadd.s32 1, %s8
  $region7: #{normalize.1} parent=0 // loop_footer_branch
    %7 = sbr.rel target = $region3
  $region8: #{normalize.1} parent=0 // loop_exit
    _

</llo_original>
